<compile_context>
chip_gen: v6e
topology: v6e:2x2x1
jax: 0.10.0
libtpu: 0.0.40
codegen_flags: <defaults>
</compile_context>

<pallas_src>
import functools

import jax
import jax.numpy as jnp
from jax.experimental import pallas as pl
from jax.experimental.pallas import tpu as pltpu

_LANES = 128
_SUBLANES = 8
_CHUNK = _SUBLANES * _LANES                 # 1024-element alignment unit
_MAX_TILE_BYTES = 4 * 1024 * 1024           # per-operand tile cap
_STREAM_BUDGET_BYTES = 20 * 1024 * 1024     # total double-buffered stream budget
_NUM_SPLITS = 2                             # parallel splits (v7x megacore)


# ---------------------------------------------------------------------------
# Tile sizing / VMEM budgeting
# ---------------------------------------------------------------------------
def _pick_block_rows(rows, itemsize, num_streams):
    """Byte-sized tiles: ~20 MiB of double-buffered streaming VMEM split over
    all operand streams, capped at 4 MiB per tile, rows a multiple of 8."""
    per_tile = min(_MAX_TILE_BYTES, _STREAM_BUDGET_BYTES // (2 * num_streams))
    block_rows = (per_tile // (_LANES * itemsize)) // _SUBLANES * _SUBLANES
    return max(_SUBLANES, min(rows, block_rows))


def _vmem_limit(block_rows, itemsizes):
    """Scoped-VMEM request: double-buffered streams + f32 intermediate
    allowance + fixed headroom (stays well under v7x's 64 MiB physical)."""
    buffered = sum(2 * block_rows * _LANES * s for s in itemsizes)
    scratch = 4 * block_rows * _LANES * 4
    return int(max(buffered + scratch + (4 << 20), 16 << 20))


# ---------------------------------------------------------------------------
# Kernels
# ---------------------------------------------------------------------------
def _none_kernel(p_ref, t_ref, o_ref, *, loss_weight):
    d = jnp.abs(p_ref[...].astype(jnp.float32) - t_ref[...].astype(jnp.float32))
    if loss_weight != 1.0:
        d = d * loss_weight
    o_ref[...] = d.astype(o_ref.dtype)


def _none_weighted_kernel(p_ref, t_ref, w_ref, o_ref, *, loss_weight):
    d = jnp.abs(p_ref[...].astype(jnp.float32) - t_ref[...].astype(jnp.float32))
    d = d * w_ref[...].astype(jnp.float32)
    if loss_weight != 1.0:
        d = d * loss_weight
    o_ref[...] = d.astype(o_ref.dtype)


def _block_start_row(block_rows, steps_per_split):
    return (pl.program_id(0) * steps_per_split + pl.program_id(1)) * block_rows


def _block_reduce(x):
    """(block_rows, 128) -> (8, 128) partial sums (block_rows % 8 == 0)."""
    return x.reshape(-1, _SUBLANES, _LANES).sum(axis=0)


def _sum_kernel(p_ref, t_ref, acc_ref, *,
                block_rows, steps_per_split, valid_rows, needs_mask):
    @pl.when(pl.program_id(1) == 0)
    def _():
        acc_ref[...] = jnp.zeros_like(acc_ref)

    d = jnp.abs(p_ref[...].astype(jnp.float32) - t_ref[...].astype(jnp.float32))

    if not needs_mask:
        acc_ref[...] += _block_reduce(d)
    else:
        row0 = _block_start_row(block_rows, steps_per_split)
        is_full = row0 + block_rows <= valid_rows

        @pl.when(is_full)
        def _():
            acc_ref[...] += _block_reduce(d)

        @pl.when(jnp.logical_not(is_full))
        def _():
            row_ids = row0 + jax.lax.broadcasted_iota(
                jnp.int32, (block_rows, _LANES), 0)
            acc_ref[...] += _block_reduce(
                jnp.where(row_ids < valid_rows, d, 0.0))


def _sum_weighted_kernel(p_ref, t_ref, w_ref, acc_ref, wacc_ref, *,
                         block_rows, steps_per_split, valid_rows, needs_mask):
    @pl.when(pl.program_id(1) == 0)
    def _():
        acc_ref[...] = jnp.zeros_like(acc_ref)
        wacc_ref[...] = jnp.zeros_like(wacc_ref)

    d = jnp.abs(p_ref[...].astype(jnp.float32) - t_ref[...].astype(jnp.float32))
    w = w_ref[...].astype(jnp.float32)

    if not needs_mask:
        acc_ref[...] += _block_reduce(d * w)
        wacc_ref[...] += _block_reduce(w)
    else:
        row0 = _block_start_row(block_rows, steps_per_split)
        is_full = row0 + block_rows <= valid_rows

        @pl.when(is_full)
        def _():
            acc_ref[...] += _block_reduce(d * w)
            wacc_ref[...] += _block_reduce(w)

        @pl.when(jnp.logical_not(is_full))
        def _():
            row_ids = row0 + jax.lax.broadcasted_iota(
                jnp.int32, (block_rows, _LANES), 0)
            mask = row_ids < valid_rows
            wm = jnp.where(mask, w, 0.0)
            acc_ref[...] += _block_reduce(jnp.where(mask, d, 0.0) * wm)
            wacc_ref[...] += _block_reduce(wm)


# ---------------------------------------------------------------------------
# Glue helpers
# ---------------------------------------------------------------------------
def _split_slab(flat):
    """Split a flat array into a 1024-aligned (rows, 128) prefix slab and a
    <1024-element tail.  No padding; the aligned fast path is copy-free."""
    n = flat.shape[0]
    n_main = (n // _CHUNK) * _CHUNK
    slab = None
    if n_main:
        main = flat if n_main == n else flat[:n_main]
        slab = main.reshape(n_main // _LANES, _LANES)
    tail = flat[n_main:] if n_main != n else None
    return slab, tail


def _prepare_weight(weight, pred):
    if weight.shape != pred.shape:
        # TODO(synk): avoid materializing broadcast weights (e.g. (N,1,H,W));
        # needs a slab layout whose grid axes align with the broadcast dim.
        weight = jnp.broadcast_to(weight, pred.shape)
    return weight.reshape(-1)


# ---------------------------------------------------------------------------
# reduction='none'
# ---------------------------------------------------------------------------
def _l1_elementwise(pred, target, weight, loss_weight, block_rows=None):
    """loss_weight * |pred - target| (* weight), same shape as pred."""
    p_flat = pred.reshape(-1)
    t_flat = target.reshape(-1)
    w_flat = _prepare_weight(weight, pred) if weight is not None else None

    p_slab, p_tail = _split_slab(p_flat)
    t_slab, t_tail = _split_slab(t_flat)
    w_slab = w_tail = None
    if w_flat is not None:
        w_slab, w_tail = _split_slab(w_flat)

    pieces = []
    if p_slab is not None:
        rows = p_slab.shape[0]
        itemsize = jnp.dtype(pred.dtype).itemsize
        num_streams = 3 if weight is None else 4     # p, t, (w), out
        br = block_rows or _pick_block_rows(rows, itemsize, num_streams)
        br = min(br, rows)
        grid = (pl.cdiv(rows, br),)
        spec = pl.BlockSpec((br, _LANES), lambda i: (i, 0))

        if weight is None:
            kernel = functools.partial(_none_kernel,
                                       loss_weight=float(loss_weight))
            operands = (p_slab, t_slab)
            in_specs = [spec, spec]
            itemsizes = [itemsize, itemsize, itemsize]
        else:
            kernel = functools.partial(_none_weighted_kernel,
                                       loss_weight=float(loss_weight))
            operands = (p_slab, t_slab, w_slab)
            in_specs = [spec, spec, spec]
            itemsizes = [itemsize, itemsize,
                         jnp.dtype(w_slab.dtype).itemsize, itemsize]

        out = pl.pallas_call(
            kernel,
            out_shape=jax.ShapeDtypeStruct((rows, _LANES), pred.dtype),
            grid=grid,
            in_specs=in_specs,
            out_specs=spec,
            compiler_params=pltpu.CompilerParams(
                dimension_semantics=("parallel",),
                vmem_limit_bytes=_vmem_limit(br, itemsizes)),
        )(*operands)
        pieces.append(out.reshape(-1))

    if p_tail is not None:
        d = jnp.abs(p_tail.astype(jnp.float32) - t_tail.astype(jnp.float32))
        if w_tail is not None:
            d = d * w_tail.astype(jnp.float32)
        if float(loss_weight) != 1.0:
            d = d * jnp.float32(loss_weight)
        pieces.append(d.astype(pred.dtype))

    flat = pieces[0] if len(pieces) == 1 else jnp.concatenate(pieces)
    return flat.reshape(pred.shape)


# ---------------------------------------------------------------------------
# reduction='sum' / 'mean'
# ---------------------------------------------------------------------------
def _l1_reduce(pred, target, weight, block_rows=None, num_splits=None):
    """Returns (sum(|p-t| [* w]), sum(broadcast w) or None)."""
    p_flat = pred.reshape(-1)
    t_flat = target.reshape(-1)
    w_flat = _prepare_weight(weight, pred) if weight is not None else None

    p_slab, p_tail = _split_slab(p_flat)
    t_slab, t_tail = _split_slab(t_flat)
    w_slab = w_tail = None
    if w_flat is not None:
        w_slab, w_tail = _split_slab(w_flat)

    total = jnp.float32(0.0)
    wsum = jnp.float32(0.0) if weight is not None else None

    if p_slab is not None:
        rows = p_slab.shape[0]
        itemsize = jnp.dtype(pred.dtype).itemsize
        num_streams = 2 if weight is None else 3      # p, t, (w)
        br = block_rows or _pick_block_rows(rows, itemsize, num_streams)
        br = min(br, rows)
        num_blocks = pl.cdiv(rows, br)
        ns = num_splits or (_NUM_SPLITS if num_blocks >= 2 * _NUM_SPLITS else 1)
        ns = min(ns, num_blocks)
        steps = pl.cdiv(num_blocks, ns)
        grid = (ns, steps)
        needs_mask = (ns * steps * br) != rows

        def in_map(c, i):
            # Clamp so over-run steps of the last split re-read a valid block;
            # their contribution is masked to zero inside the kernel.
            return (jnp.minimum(c * steps + i, num_blocks - 1), 0)

        in_spec = pl.BlockSpec((br, _LANES), in_map)
        acc_spec = pl.BlockSpec((_SUBLANES, _LANES), lambda c, i: (c, 0))
        acc_shape = jax.ShapeDtypeStruct((ns * _SUBLANES, _LANES), jnp.float32)
        common = dict(block_rows=br, steps_per_split=steps,
                      valid_rows=rows, needs_mask=needs_mask)

        if weight is None:
            itemsizes = [itemsize, itemsize]
        else:
            itemsizes = [itemsize, itemsize, jnp.dtype(w_slab.dtype).itemsize]
        cparams = pltpu.CompilerParams(
            dimension_semantics=("parallel", "arbitrary"),
            vmem_limit_bytes=_vmem_limit(br, itemsizes))

        if weight is None:
            acc = pl.pallas_call(
                functools.partial(_sum_kernel, **common),
                out_shape=acc_shape,
                grid=grid,
                in_specs=[in_spec, in_spec],
                out_specs=acc_spec,
                compiler_params=cparams,
            )(p_slab, t_slab)
            total = total + jnp.sum(acc)
        else:
            acc, wacc = pl.pallas_call(
                functools.partial(_sum_weighted_kernel, **common),
                out_shape=(acc_shape, acc_shape),
                grid=grid,
                in_specs=[in_spec, in_spec, in_spec],
                out_specs=(acc_spec, acc_spec),
                compiler_params=cparams,
            )(p_slab, t_slab, w_slab)
            total = total + jnp.sum(acc)
            wsum = wsum + jnp.sum(wacc)

    if p_tail is not None:
        d = jnp.abs(p_tail.astype(jnp.float32) - t_tail.astype(jnp.float32))
        if weight is None:
            total = total + jnp.sum(d)
        else:
            tw = w_tail.astype(jnp.float32)
            total = total + jnp.sum(d * tw)
            wsum = wsum + jnp.sum(tw)

    return total, wsum


# ---------------------------------------------------------------------------
# Module-equivalent wrapper
# ---------------------------------------------------------------------------
class L1Loss:
    """Pallas port of basicsr L1Loss (MAE) with weighted_loss semantics."""

    def __init__(self, loss_weight=1.0, reduction='mean'):
        if reduction not in ('none', 'mean', 'sum'):
            raise ValueError(f'Unsupported reduction mode: {reduction}. '
                             f"Supported ones are: ['none', 'mean', 'sum']")
        # TODO(synk): loss_weight must be a static Python scalar (it is fused
        # into the kernel); a traced/learned loss_weight is not supported.
        self.loss_weight = loss_weight
        self.reduction = reduction

    def __call__(self, pred, target, weight=None, **kwargs):
        if self.reduction == 'none':
            return _l1_elementwise(pred, target, weight, self.loss_weight)

        total, wsum = _l1_reduce(pred, target, weight)

        if self.reduction == 'sum':
            return self.loss_weight * total

        # reduction == 'mean'
        if weight is None:
            denom = jnp.float32(pred.size)
        else:
            # basicsr weight_reduce_loss: sum / weight.sum() (a singleton-
            # channel weight's broadcast sum equals weight.sum() * C).
            denom = wsum
        return self.loss_weight * (total / denom)


# ---------------------------------------------------------------------------
# Demo / self-check
# ---------------------------------------------------------------------------
if __name__ == "__main__":
    key = jax.random.PRNGKey(0)
    k1, k2, k3 = jax.random.split(key, 3)
    N, C, H, W = 2, 4, 16, 16
    pred = jax.random.normal(k1, (N, C, H, W), dtype=jnp.float32)
    target = jax.random.normal(k2, (N, C, H, W), dtype=jnp.float32)
    weight = jax.random.uniform(k3, (N, C, H, W), dtype=jnp.float32) + 0.1

    # mean (default), no weight
    out_mean = L1Loss(loss_weight=1.0, reduction='mean')(pred, target)
    jax.block_until_ready(out_mean)
    ref_mean = jnp.mean(jnp.abs(pred - target))
    assert jnp.allclose(out_mean, ref_mean, rtol=1e-5, atol=1e-5)

    # sum, no weight
    out_sum = L1Loss(loss_weight=2.0, reduction='sum')(pred, target)
    ref_sum = 2.0 * jnp.sum(jnp.abs(pred - target))
    assert jnp.allclose(out_sum, ref_sum, rtol=1e-5, atol=1e-4)

    # none, with elementwise weight and fused loss_weight
    out_none = L1Loss(loss_weight=0.5, reduction='none')(pred, target, weight)
    ref_none = 0.5 * jnp.abs(pred - target) * weight
    assert out_none.shape == (N, C, H, W)
    assert jnp.allclose(out_none, ref_none, rtol=1e-5, atol=1e-6)

    # mean, with elementwise weight (weighted_loss: sum / weight.sum())
    out_wmean = L1Loss(loss_weight=1.0, reduction='mean')(pred, target, weight)
    ref_wmean = jnp.sum(jnp.abs(pred - target) * weight) / jnp.sum(weight)
    assert jnp.allclose(out_wmean, ref_wmean, rtol=1e-5, atol=1e-5)

    # broadcastable (N,1,H,W) weight: denominator = weight.sum() * C
    w_c1 = jax.random.uniform(k3, (N, 1, H, W), dtype=jnp.float32) + 0.1
    out_bmean = L1Loss(loss_weight=1.0, reduction='mean')(pred, target, w_c1)
    ref_bmean = jnp.sum(jnp.abs(pred - target) * w_c1) / (jnp.sum(w_c1) * C)
    assert jnp.allclose(out_bmean, ref_bmean, rtol=1e-5, atol=1e-5)

    # non-1024-aligned element count (aligned-prefix kernel + JAX tail)
    p2 = jax.random.normal(k1, (2, 3, 15, 15), dtype=jnp.float32)
    t2 = jax.random.normal(k2, (2, 3, 15, 15), dtype=jnp.float32)
    out2 = L1Loss(loss_weight=1.0, reduction='mean')(p2, t2)
    assert jnp.allclose(out2, jnp.mean(jnp.abs(p2 - t2)), rtol=1e-5, atol=1e-5)
    out2n = L1Loss(loss_weight=1.0, reduction='none')(p2, t2)
    assert out2n.shape == p2.shape
    assert jnp.allclose(out2n, jnp.abs(p2 - t2), rtol=1e-6, atol=1e-6)

    # forced small tiles: multi-block reduce with split axis + overrun masking
    p3 = jax.random.normal(k1, (2, 9, 128, 128), dtype=jnp.float32)
    t3 = jax.random.normal(k2, (2, 9, 128, 128), dtype=jnp.float32)
    w3 = jax.random.uniform(k3, (2, 9, 128, 128), dtype=jnp.float32) + 0.1
    tot3, _ = _l1_reduce(p3, t3, None, block_rows=256, num_splits=2)
    assert jnp.allclose(tot3, jnp.sum(jnp.abs(p3 - t3)), rtol=1e-4, atol=1e-1)
    tot3w, wsum3 = _l1_reduce(p3, t3, w3, block_rows=256, num_splits=2)
    assert jnp.allclose(tot3w, jnp.sum(jnp.abs(p3 - t3) * w3),
                        rtol=1e-4, atol=1e-1)
    assert jnp.allclose(wsum3, jnp.sum(w3), rtol=1e-4, atol=1e-1)

    # forced small tiles: 'none' path with a partial last block
    out3n = _l1_elementwise(p3, t3, None, 1.0, block_rows=512)
    assert jnp.allclose(out3n, jnp.abs(p3 - t3), rtol=1e-6, atol=1e-6)

    # bf16 inputs (dtype-aware tiling, f32 accumulation in-kernel)
    pb = pred.astype(jnp.bfloat16)
    tb = target.astype(jnp.bfloat16)
    outb = L1Loss(loss_weight=1.0, reduction='none')(pb, tb)
    refb = jnp.abs(pb.astype(jnp.float32) - tb.astype(jnp.float32))
    assert outb.dtype == jnp.bfloat16
    assert jnp.allclose(outb.astype(jnp.float32), refb, rtol=1e-2, atol=1e-2)
    outbm = L1Loss(loss_weight=1.0, reduction='mean')(pb, tb)
    assert jnp.allclose(outbm, jnp.mean(refb), rtol=1e-3, atol=1e-3)

    jax.block_until_ready(out3n)
    print("KERNEL_OK")
</pallas_src>

<mosaic_0001>
module attributes {stable_mosaic.version = 11 : i64} {
  func.func @_sum_kernel(%arg0: i32, %arg1: i32, %arg2: memref<16x128xf32, #tpu.memory_space<vmem>>, %arg3: memref<16x128xf32, #tpu.memory_space<vmem>>, %arg4: memref<8x128xf32, #tpu.memory_space<vmem>>) attributes {dimension_semantics = [#tpu.dimension_semantics<parallel>, #tpu.dimension_semantics<arbitrary>], iteration_bounds = array<i64: 1, 1>, scalar_prefetch = 0 : i64, scratch_operands = 0 : i64, tpu.core_type = #tpu.core_type<tc>, window_params = [{transform_indices = @transform_0, window_bounds = array<i64: 16, 128>}, {transform_indices = @transform_1, window_bounds = array<i64: 16, 128>}, {transform_indices = @transform_2, window_bounds = array<i64: 8, 128>}]} {
    %c0_i32 = arith.constant 0 : i32
    %0 = arith.cmpi eq, %arg1, %c0_i32 : i32
    %1 = arith.extui %0 : i1 to i32
    %c0_i32_0 = arith.constant 0 : i32
    %2 = arith.cmpi ne, %1, %c0_i32_0 : i32
    scf.if %2 {
      %cst_8 = arith.constant 0.000000e+00 : f32
      %12 = vector.broadcast %cst_8 : f32 to vector<8x128xf32>
      %c0_9 = arith.constant 0 : index
      %c0_10 = arith.constant 0 : index
      %13 = vector.load %arg4[%c0_9, %c0_10] : memref<8x128xf32, #tpu.memory_space<vmem>>, vector<8x128xf32>
      tpu.vector_store %arg4[%c0_9, %c0_10], %12 {strides = array<i32>} : memref<8x128xf32, #tpu.memory_space<vmem>>, vector<8x128xf32>,
    } else {
    }
    %c0 = arith.constant 0 : index
    %c0_1 = arith.constant 0 : index
    %3 = vector.load %arg2[%c0, %c0_1] : memref<16x128xf32, #tpu.memory_space<vmem>>, vector<16x128xf32>
    %c0_2 = arith.constant 0 : index
    %c0_3 = arith.constant 0 : index
    %4 = vector.load %arg3[%c0_2, %c0_3] : memref<16x128xf32, #tpu.memory_space<vmem>>, vector<16x128xf32>
    %5 = arith.subf %3, %4 : vector<16x128xf32>
    %6 = math.absf %5 : vector<16x128xf32>
    %c0_4 = arith.constant 0 : index
    %c0_5 = arith.constant 0 : index
    %7 = vector.load %arg4[%c0_4, %c0_5] : memref<8x128xf32, #tpu.memory_space<vmem>>, vector<8x128xf32>
    %8 = vector.shape_cast %6 : vector<16x128xf32> to vector<2x8x128xf32>
    %cst = arith.constant dense<0.000000e+00> : vector<8x128xf32>
    %9 = vector.multi_reduction <add>, %8, %cst [0] : vector<2x8x128xf32> to vector<8x128xf32>
    %10 = arith.addf %7, %9 : vector<8x128xf32>
    %c0_6 = arith.constant 0 : index
    %c0_7 = arith.constant 0 : index
    %11 = vector.load %arg4[%c0_6, %c0_7] : memref<8x128xf32, #tpu.memory_space<vmem>>, vector<8x128xf32>
    tpu.vector_store %arg4[%c0_6, %c0_7], %10 {strides = array<i32>} : memref<8x128xf32, #tpu.memory_space<vmem>>, vector<8x128xf32>,
    return
  }
  func.func @transform_0(%arg0: i32, %arg1: i32) -> (i32, i32) {
    %c1_i32 = arith.constant 1 : i32
    %0 = arith.muli %arg0, %c1_i32 : i32
    %1 = arith.addi %0, %arg1 : i32
    %c0_i32 = arith.constant 0 : i32
    %2 = arith.minsi %1, %c0_i32 : i32
    %c0_i32_0 = arith.constant 0 : i32
    %c0_i32_1 = arith.constant 0 : i32
    return %2, %c0_i32_0 : i32, i32
  }
  func.func @transform_1(%arg0: i32, %arg1: i32) -> (i32, i32) {
    %c1_i32 = arith.constant 1 : i32
    %0 = arith.muli %arg0, %c1_i32 : i32
    %1 = arith.addi %0, %arg1 : i32
    %c0_i32 = arith.constant 0 : i32
    %2 = arith.minsi %1, %c0_i32 : i32
    %c0_i32_0 = arith.constant 0 : i32
    %c0_i32_1 = arith.constant 0 : i32
    return %2, %c0_i32_0 : i32, i32
  }
  func.func @transform_2(%arg0: i32, %arg1: i32) -> (i32, i32) {
    %c0_i32 = arith.constant 0 : i32
    %c0_i32_0 = arith.constant 0 : i32
    return %arg0, %c0_i32 : i32, i32
  }
}

</mosaic_0001>

<llo_original>
// kernel: tpu_custom_call.1
$region0: #{tpu_custom_call.1}
  #allocation0 [shape = 'u32[]', space=smem, size = 0x4, offset = 0x4, fixed_abs, tag = 'smem constant byte address 0x4 - core index']
  #allocation1 [shape = 'u32[144,128]{1,0:T(1,128)}', space=vmem, size = 0x12000, scoped, tag = 'internal scratch']
  %s0 = inlined_call_operand.hbm [shape: f32[16,128], index: 0, kind: input, shape index: {}]
  %s1 = inlined_call_operand.hbm [shape: f32[16,128], index: 1, kind: input, shape index: {}]
  %s2 = inlined_call_operand.hbm [shape: f32[8,128], index: 2, kind: output, shape index: {}]
  %s3 = sld [smem:[#allocation0]]
  $region30: #{tpu_custom_call.1} parent=0
    _
  %s5 = ssub.s32 1, %s3
  %s6 = scalar_select 0, %s5, %s3
  $region1: #{tpu_custom_call.1} parent=0
    #allocation2 [shape = 'u8[8192]{0}', space=vmem, size = 0x2000, scoped, tag = 'input window, operand 0, single buffered']
    #allocation3 [shape = 's32[1]{0}', space=sflag, size = 0x4, scoped, tag = 'scoped memory for tpu_custom_call.1']
    #allocation4 [shape = 's32[1]{0}', space=sflag, size = 0x4, scoped, tag = 'scoped memory for tpu_custom_call.1']
    #allocation5 [shape = 'u8[8192]{0}', space=vmem, size = 0x2000, scoped, tag = 'input window, operand 1, single buffered']
    #allocation6 [shape = 's32[1]{0}', space=sflag, size = 0x4, scoped, tag = 'scoped memory for tpu_custom_call.1']
    #allocation7 [shape = 'u8[4096]{0}', space=vmem, size = 0x1000, scoped, tag = 'output window, operand 0, single buffered']
    %7 = vsyncpa [#allocation3], 0
    %8 = vsyncpa [#allocation6], 0
    %9 = vsyncpa [#allocation4], 0
    // Predicated region
    $region2: #{tpu_custom_call.1} parent=1 // pred_check
      _
    $region3: #{tpu_custom_call.1} parent=1 // pred_check_branch
      %11 = sbr.rel (0) target = $region5
    $region4: #{tpu_custom_call.1} parent=1 // pred_region
      %s12 = sadd.s32 0, 0
      %p13 = scmp.lt.s32.totalorder %s12, 0
      %s14 = scalar_select %p13, %s12, 0
      %s15 = smul.u32 2, %s14
      %s17 = ssub.s32 256, 256
      %18 = vsyncadd [#allocation3], %s17
      %s19 = smul.addr %s15, 128
      %s20 = scalar_lea.hbm %s0, %s19
      %s21 = sshll.u32 [#allocation2], 4
      %s22 = int_to_ptr.vmem [resolvable:$true] %s21
      %27 = dma.hbm_to_vmem [thread:$0]  %s20, 256, %s22, [#allocation3], 128, 128, 8
    $region5: #{tpu_custom_call.1} parent=1 // pred_fallthru
      _
    // Predicated region
    $region6: #{tpu_custom_call.1} parent=1 // pred_check
      _
    $region7: #{tpu_custom_call.1} parent=1 // pred_check_branch
      %29 = sbr.rel (0) target = $region9
    $region8: #{tpu_custom_call.1} parent=1 // pred_region
      %s30 = sadd.s32 0, 0
      %p31 = scmp.lt.s32.totalorder %s30, 0
      %s32 = scalar_select %p31, %s30, 0
      %s33 = smul.u32 2, %s32
      %s35 = ssub.s32 256, 256
      %36 = vsyncadd [#allocation6], %s35
      %s37 = smul.addr %s33, 128
      %s38 = scalar_lea.hbm %s1, %s37
      %s39 = sshll.u32 [#allocation5], 4
      %s40 = int_to_ptr.vmem [resolvable:$true] %s39
      %45 = dma.hbm_to_vmem [thread:$0]  %s38, 256, %s40, [#allocation6], 128, 128, 8
    $region9: #{tpu_custom_call.1} parent=1 // pred_fallthru
      _
    // Predicated region
    $region10: #{tpu_custom_call.1} parent=1 // pred_check
      _
    $region11: #{tpu_custom_call.1} parent=1 // pred_check_branch
      %47 = sbr.rel (0) target = $region13
    $region12: #{tpu_custom_call.1} parent=1 // pred_region
      %48 = dma.done [#allocation3], 256
    $region13: #{tpu_custom_call.1} parent=1 // pred_fallthru
      _
    // Predicated region
    $region14: #{tpu_custom_call.1} parent=1 // pred_check
      _
    $region15: #{tpu_custom_call.1} parent=1 // pred_check_branch
      %50 = sbr.rel (0) target = $region17
    $region16: #{tpu_custom_call.1} parent=1 // pred_region
      %51 = dma.done [#allocation6], 256
    $region17: #{tpu_custom_call.1} parent=1 // pred_fallthru
      _
    %s52 = sadd.s32 0, 0
    %p53 = scmp.lt.s32.totalorder %s52, 0
    %s54 = scalar_select %p53, %s52, 0
    %s55 = smul.u32 2, %s54
    %s56 = sadd.s32 0, 0
    %p57 = scmp.lt.s32.totalorder %s56, 0
    %s58 = scalar_select %p57, %s56, 0
    %s59 = smul.u32 2, %s58
    %p60 = scmp.eq.s32.totalorder 0, 0
    // Predicated region
    $region18: #{tpu_custom_call.1} parent=1 // pred_check
      %p61 = pneg %p60
    $region19: #{tpu_custom_call.1} parent=1 // pred_check_branch
      %63 = sbr.rel (%p61) target = $region21
    $region20: #{tpu_custom_call.1} parent=1 // pred_region
      %64 = vst [vmem:[#allocation7] sm:$0xff] 0.0
    $region21: #{tpu_custom_call.1} parent=1 // pred_fallthru
      _
    %v65 = vld [vmem:[#allocation2] sm:$0xff]
    %v66 = vld [vmem:[#allocation2 + $0x8] sm:$0xff]
    %v67 = vld [vmem:[#allocation5] sm:$0xff]
    %v68 = vld [vmem:[#allocation5 + $0x8] sm:$0xff]
    %v69 = vsub.f32 %v65, %v67
    %v70 = vsub.f32 %v66, %v68
    %v71 = vand.u32 2147483647, %v69
    %v72 = vand.u32 2147483647, %v70
    %v73 = vld [vmem:[#allocation7] sm:$0xff]
    %v74 = vadd.f32 %v71, %v72
    %v75 = vadd.f32 %v73, %v74
    %76 = vst [vmem:[#allocation7] sm:$0xff] %v75
    // Predicated region
    $region22: #{tpu_custom_call.1} parent=1 // pred_check
      _
    $region23: #{tpu_custom_call.1} parent=1 // pred_check_branch
      %78 = sbr.rel (0) target = $region25
    $region24: #{tpu_custom_call.1} parent=1 // pred_region
      %s80 = ssub.s32 128, 128
      %81 = vsyncadd [#allocation4], %s80
      %s83 = sshll.u32 [#allocation7], 4
      %s84 = int_to_ptr.vmem [resolvable:$true] %s83
      %86 = dma.vmem_to_hbm [thread:$0]  %s84, 128, %s2, [#allocation4]
    $region25: #{tpu_custom_call.1} parent=1 // pred_fallthru
      _
    // Predicated region
    $region26: #{tpu_custom_call.1} parent=1 // pred_check
      _
    $region27: #{tpu_custom_call.1} parent=1 // pred_check_branch
      %88 = sbr.rel (0) target = $region29
    $region28: #{tpu_custom_call.1} parent=1 // pred_region
      %89 = dma.done [#allocation4], 128
    $region29: #{tpu_custom_call.1} parent=1 // pred_fallthru
      _
    %90 = vsyncpa [#allocation3], 1
    %91 = vsyncpa [#allocation6], 1
    %92 = vsyncpa [#allocation4], 1

</llo_original>
